<compile_context>
chip_gen: v7x
topology: tpu7x:2x2x1
jax: 0.10.0
libtpu: 0.0.40
codegen_flags: <defaults>
</compile_context>

<pallas_src>
import functools

import jax
import jax.numpy as jnp
from jax.experimental import pallas as pl
from jax.experimental.pallas import tpu as pltpu

FILTER_SIZE = 11
N_ITER = 5
R = FILTER_SIZE // 2                              # 5 offsets on each side
OFFSETS = [d for d in range(-R, R + 1) if d != 0]
HALO = 128                                        # one vreg column >= N_ITER*R = 25


def _sigmoid(x):
    # 0.5 + 0.5*tanh(0.5*x): tanh runs on the EUP slot, freeing VALU slots.
    return 0.5 + 0.5 * jnp.tanh(0.5 * x)


def _crf_kernel(unary_hbm, feat_hbm, out_ref, ubuf, fbuf, sem, *,
                theta, w_pair, t_valid):
    """One (b_blk, t_blk) output tile; inputs are raw HBM refs (manual DMA)."""
    b_blk, tw = ubuf.shape                    # window width = t_blk + 2*halo
    c = fbuf.shape[0]
    t_blk = out_ref.shape[1]
    halo = (tw - t_blk) // 2

    bi = pl.program_id(0)
    tj = pl.program_id(1)
    b0 = pl.multiple_of(bi * b_blk, b_blk)
    t0 = pl.multiple_of(tj * t_blk, 128)      # start in the halo-padded time axis

    # Copy the overlapping (halo) window into VMEM.
    cp_u = pltpu.make_async_copy(
        unary_hbm.at[pl.ds(b0, b_blk), pl.ds(t0, tw)], ubuf, sem.at[0])
    cp_f = pltpu.make_async_copy(
        feat_hbm.at[:, pl.ds(b0, b_blk), pl.ds(t0, tw)], fbuf, sem.at[1])
    cp_u.start()
    cp_f.start()
    cp_u.wait()
    cp_f.wait()

    u = ubuf[...]                                             # (b_blk, tw) f32
    inv_2t2 = 1.0 / (2.0 * theta * theta)
    two_w = 2.0 * w_pair

    # Global (unpadded) sequence position of every lane column in this window.
    lane = jax.lax.broadcasted_iota(jnp.int32, (b_blk, tw), 1)
    gpos = lane + (t0 - halo)

    # ---- Precompute windowed Gaussian kernels (channel-outer streaming). ----
    diff2 = [jnp.zeros_like(u) for _ in range(R)]
    for ci in range(c):
        fc = fbuf[ci]                                         # (b_blk, tw)
        for d in range(1, R + 1):
            dfc = fc - pltpu.roll(fc, shift=(tw - d) % tw, axis=1)  # i <- f[i+d]
            diff2[d - 1] = diff2[d - 1] + dfc * dfc

    # Only the 5 positive-offset kernels are materialized (pre-scaled by 2*w):
    #   k_{-d}(i) = k_{+d}(i-d) = roll(k_{+d}, +d); wrap/invalid entries are
    #   zero by construction (k_{+d} is masked to valid (i, i+d) pairs).
    ks = []
    k_sum = jnp.zeros_like(u)
    for d in range(1, R + 1):
        valid = jnp.logical_and(gpos >= 0, gpos + d < t_valid)
        k_pos = jnp.where(valid, jnp.exp(-diff2[d - 1] * inv_2t2), 0.0)
        k_sum = k_sum + k_pos + pltpu.roll(k_pos, shift=d, axis=1)
        ks.append(two_w * k_pos)

    # Fold constants out of the hot loop:
    #   q = sigmoid(u + w*(2*sum_d k_d q_{i+d} - k_sum)) = sigmoid(u_eff + acc)
    u_eff = u - w_pair * k_sum

    # ---- Mean-field iterations (statically unrolled). ----
    q = _sigmoid(u)
    for _ in range(N_ITER):
        acc0 = jnp.zeros_like(u)          # two partial accumulators (ILP)
        acc1 = jnp.zeros_like(u)
        for d, k_d in zip(range(1, R + 1), ks):
            # + offset: element i <- k_d(i) * q[i + d]
            acc0 = acc0 + k_d * pltpu.roll(q, shift=(tw - d) % tw, axis=1)
            # - offset: element i <- k_d(i - d) * q[i - d]
            acc1 = acc1 + pltpu.roll(k_d * q, shift=d, axis=1)
        q = _sigmoid(u_eff + (acc0 + acc1))

    # Single lane-dense store of the central (non-halo) region.
    out_ref[...] = q[:, halo:halo + t_blk]


def _vmem_capacity_bytes():
    try:
        info = pltpu.get_tpu_info()
        for name in ("vmem_capacity_bytes", "vmem_size_bytes", "vmem_bytes"):
            v = getattr(info, name, None)
            if v:
                return int(v)
    except Exception:
        pass
    return 64 * 2**20     # conservative (v7x-sized) fallback


def _choose_tiling(t128, b_blk, c, vmem_cap):
    """Pick (t_blk, halo). Single block (halo=0) whenever it fits the budget."""
    per_col = 4 * b_blk * (c + 19)          # conservative live f32 slabs / column
    budget = max(8 * 2**20, int(0.45 * vmem_cap))
    t_fit = max(128, (budget // per_col) // 128 * 128)
    if t128 <= t_fit:
        return t128, 0
    t_blk = max(128, min(t_fit - 2 * HALO, 16 * 1024))
    return t_blk, HALO


def crf_rnn_forward(logits, p, theta=1.0, w_pair=1.0, *, b_blk=None, t_blk=None):
    """CRFRNN.forward: crf(logits.unsqueeze(1), p.permute(0,2,1)).squeeze().

    logits: (B, T) float, p: (B, T, C) float -> (B, T) float32 marginals.
    """
    B, T = logits.shape
    C = p.shape[-1]
    vmem_cap = _vmem_capacity_bytes()

    # Batch tile (sublane-dense); larger tiles amortize per-grid-step overhead.
    if b_blk is None:
        if B <= 8:
            b_blk = 8
        elif vmem_cap >= 96 * 2**20 and B > 16:
            b_blk = 32
        else:
            b_blk = 16
    B_pad = pl.cdiv(B, b_blk) * b_blk

    # Time tiling (lane-dense, multiple of 128) with an exact 128-lane halo.
    t128 = max(128, pl.cdiv(T, 128) * 128)
    if t_blk is None:
        t_blk, halo = _choose_tiling(t128, b_blk, C, vmem_cap)
    else:
        t_blk = max(128, (int(t_blk) // 128) * 128)
        halo = 0 if t_blk >= t128 else HALO
        t_blk = min(t_blk, t128)
    T_pad = pl.cdiv(t128, t_blk) * t_blk
    nb, nt = B_pad // b_blk, T_pad // t_blk
    tw = t_blk + 2 * halo

    # Prepare inputs: (B_pad, T_pad + 2*halo) unary and (C, B_pad, T_pad+2*halo)
    # features. Pad is a single fused op and skipped entirely when not needed.
    u32 = logits.astype(jnp.float32)
    f32 = jnp.transpose(p.astype(jnp.float32), (2, 0, 1))      # (C, B, T)
    pad_b, pad_l, pad_r = B_pad - B, halo, T_pad - T + halo
    if pad_b or pad_l or pad_r:
        unary = jnp.pad(u32, ((0, pad_b), (pad_l, pad_r)))
        feat = jnp.pad(f32, ((0, 0), (0, pad_b), (pad_l, pad_r)))
    else:
        unary, feat = u32, f32

    kernel = functools.partial(
        _crf_kernel, theta=float(theta), w_pair=float(w_pair), t_valid=T)

    vmem_limit = int(0.5 * vmem_cap)        # generation-aware cap with headroom

    out = pl.pallas_call(
        kernel,
        out_shape=jax.ShapeDtypeStruct((B_pad, T_pad), jnp.float32),
        grid=(nb, nt),
        in_specs=[
            pl.BlockSpec(memory_space=pl.ANY),     # unary stays in HBM
            pl.BlockSpec(memory_space=pl.ANY),     # features stay in HBM
        ],
        out_specs=pl.BlockSpec((b_blk, t_blk), lambda b, t: (b, t)),
        scratch_shapes=[
            pltpu.VMEM((b_blk, tw), jnp.float32),
            pltpu.VMEM((C, b_blk, tw), jnp.float32),
            pltpu.SemaphoreType.DMA((2,)),
        ],
        compiler_params=pltpu.CompilerParams(
            dimension_semantics=("parallel", "parallel"),
            vmem_limit_bytes=vmem_limit,
        ),
    )(unary, feat)

    return out[:B, :T]


def crf_rnn_reference(logits, p, theta=1.0, w_pair=1.0):
    """Pure-JAX reference for correctness checking."""
    B, T = logits.shape
    u = logits.astype(jnp.float32)
    feat = jnp.transpose(p.astype(jnp.float32), (0, 2, 1))     # (B, C, T)
    idx = jnp.arange(T)

    ks, valids = [], []
    for d in OFFSETS:
        valid = jnp.logical_and(idx + d >= 0, idx + d < T)[None, :]   # (1, T)
        f_sh = jnp.roll(feat, -d, axis=-1)
        diff2 = jnp.sum((feat - f_sh) ** 2, axis=1)                   # (B, T)
        ks.append(jnp.where(valid, jnp.exp(-diff2 / (2.0 * theta * theta)), 0.0))
        valids.append(valid)

    q = jax.nn.sigmoid(u)
    for _ in range(N_ITER):
        msg = jnp.zeros_like(u)
        for k, valid, d in zip(ks, valids, OFFSETS):
            q_sh = jnp.where(valid, jnp.roll(q, -d, axis=-1), 0.0)
            msg = msg + k * (2.0 * q_sh - 1.0)
        q = jax.nn.sigmoid(u + w_pair * msg)
    return q


if __name__ == "__main__":
    THETA = 1.0      # assumed Gaussian kernel bandwidth
    W_PAIR = 1.0     # assumed pairwise potential weight

    key = jax.random.PRNGKey(0)
    k1, k2, k3, k4 = jax.random.split(key, 4)

    # Primary small-shape check (single time block, halo = 0).
    B, T, C = 2, 16, 4
    logits = jax.random.normal(k1, (B, T), dtype=jnp.float32)
    p = jax.random.normal(k2, (B, T, C), dtype=jnp.float32)
    out = jax.block_until_ready(crf_rnn_forward(logits, p, THETA, W_PAIR))
    ref = crf_rnn_reference(logits, p, THETA, W_PAIR)
    assert out.shape == (B, T), out.shape
    assert jnp.allclose(out, ref, rtol=1e-4, atol=5e-5), (
        float(jnp.max(jnp.abs(out - ref))))

    # Secondary check: force the haloed, time-tiled path (3 blocks of 256 lanes)
    # to make sure the long-sequence code path is also exact.
    B2, T2, C2 = 2, 700, 3
    logits2 = jax.random.normal(k3, (B2, T2), dtype=jnp.float32)
    p2 = jax.random.normal(k4, (B2, T2, C2), dtype=jnp.float32)
    out2 = jax.block_until_ready(
        crf_rnn_forward(logits2, p2, THETA, W_PAIR, t_blk=256))
    ref2 = crf_rnn_reference(logits2, p2, THETA, W_PAIR)
    assert out2.shape == (B2, T2), out2.shape
    assert jnp.allclose(out2, ref2, rtol=1e-4, atol=5e-5), (
        float(jnp.max(jnp.abs(out2 - ref2))))

    print("KERNEL_OK")
</pallas_src>

<mosaic_0001>
module attributes {stable_mosaic.version = 11 : i64} {
  func.func @_crf_kernel(%arg0: i32, %arg1: i32, %arg2: memref<8x128xf32, #tpu.memory_space<any>>, %arg3: memref<4x8x128xf32, #tpu.memory_space<any>>, %arg4: memref<8x128xf32, #tpu.memory_space<vmem>>, %arg5: memref<8x128xf32, #tpu.memory_space<vmem>>, %arg6: memref<4x8x128xf32, #tpu.memory_space<vmem>>, %arg7: memref<2x!tpu.dma_semaphore, #tpu.memory_space<semaphore_mem>>) attributes {dimension_semantics = [#tpu.dimension_semantics<parallel>, #tpu.dimension_semantics<parallel>], iteration_bounds = array<i64: 1, 1>, scalar_prefetch = 0 : i64, scratch_operands = 3 : i64, tpu.core_type = #tpu.core_type<tc>, window_params = [{}, {}, {transform_indices = @transform_2, window_bounds = array<i64: 8, 128>}]} {
    %c8_i32 = arith.constant 8 : i32
    %0 = arith.muli %arg0, %c8_i32 : i32
    %1 = tpu.assume_multiple %0, 8 : i32
    %c128_i32 = arith.constant 128 : i32
    %2 = arith.muli %arg1, %c128_i32 : i32
    %3 = tpu.assume_multiple %2, 128 : i32
    %c0_i32 = arith.constant 0 : i32
    %4 = tpu.memref_slice %arg2[%1, %3] : memref<8x128xf32, #tpu.memory_space<any>> -> memref<8x128xf32, #tpu.memory_space<any>>
    %5 = tpu.memref_slice %arg7[%c0_i32] : memref<2x!tpu.dma_semaphore, #tpu.memory_space<semaphore_mem>> -> memref<1x!tpu.dma_semaphore, #tpu.memory_space<semaphore_mem>>
    %6 = tpu.memref_squeeze %5 : memref<1x!tpu.dma_semaphore, #tpu.memory_space<semaphore_mem>> -> memref<!tpu.dma_semaphore, #tpu.memory_space<semaphore_mem>>
    tpu.enqueue_dma source(%4 : memref<8x128xf32, #tpu.memory_space<any>>) target(%arg5 : memref<8x128xf32, #tpu.memory_space<vmem>>) target_semaphore(%6 : memref<!tpu.dma_semaphore, #tpu.memory_space<semaphore_mem>>)
    %c1_i32 = arith.constant 1 : i32
    %c0_i32_0 = arith.constant 0 : i32
    %7 = tpu.memref_slice %arg3[%c0_i32_0, %1, %3] : memref<4x8x128xf32, #tpu.memory_space<any>> -> memref<4x8x128xf32, #tpu.memory_space<any>>
    %8 = tpu.memref_slice %arg7[%c1_i32] : memref<2x!tpu.dma_semaphore, #tpu.memory_space<semaphore_mem>> -> memref<1x!tpu.dma_semaphore, #tpu.memory_space<semaphore_mem>>
    %9 = tpu.memref_squeeze %8 : memref<1x!tpu.dma_semaphore, #tpu.memory_space<semaphore_mem>> -> memref<!tpu.dma_semaphore, #tpu.memory_space<semaphore_mem>>
    tpu.enqueue_dma source(%7 : memref<4x8x128xf32, #tpu.memory_space<any>>) target(%arg6 : memref<4x8x128xf32, #tpu.memory_space<vmem>>) target_semaphore(%9 : memref<!tpu.dma_semaphore, #tpu.memory_space<semaphore_mem>>)
    %c0_i32_1 = arith.constant 0 : i32
    %10 = tpu.memref_slice %arg2[%1, %3] : memref<8x128xf32, #tpu.memory_space<any>> -> memref<8x128xf32, #tpu.memory_space<any>>
    %11 = tpu.memref_slice %arg7[%c0_i32_1] : memref<2x!tpu.dma_semaphore, #tpu.memory_space<semaphore_mem>> -> memref<1x!tpu.dma_semaphore, #tpu.memory_space<semaphore_mem>>
    %12 = tpu.memref_squeeze %11 : memref<1x!tpu.dma_semaphore, #tpu.memory_space<semaphore_mem>> -> memref<!tpu.dma_semaphore, #tpu.memory_space<semaphore_mem>>
    tpu.wait_dma2 semaphore(%12 : memref<!tpu.dma_semaphore, #tpu.memory_space<semaphore_mem>>) src(%10 : memref<8x128xf32, #tpu.memory_space<any>>) dst(%arg5 : memref<8x128xf32, #tpu.memory_space<vmem>>)
    %c1_i32_2 = arith.constant 1 : i32
    %c0_i32_3 = arith.constant 0 : i32
    %13 = tpu.memref_slice %arg3[%c0_i32_3, %1, %3] : memref<4x8x128xf32, #tpu.memory_space<any>> -> memref<4x8x128xf32, #tpu.memory_space<any>>
    %14 = tpu.memref_slice %arg7[%c1_i32_2] : memref<2x!tpu.dma_semaphore, #tpu.memory_space<semaphore_mem>> -> memref<1x!tpu.dma_semaphore, #tpu.memory_space<semaphore_mem>>
    %15 = tpu.memref_squeeze %14 : memref<1x!tpu.dma_semaphore, #tpu.memory_space<semaphore_mem>> -> memref<!tpu.dma_semaphore, #tpu.memory_space<semaphore_mem>>
    tpu.wait_dma2 semaphore(%15 : memref<!tpu.dma_semaphore, #tpu.memory_space<semaphore_mem>>) src(%13 : memref<4x8x128xf32, #tpu.memory_space<any>>) dst(%arg6 : memref<4x8x128xf32, #tpu.memory_space<vmem>>)
    %c0 = arith.constant 0 : index
    %c0_4 = arith.constant 0 : index
    %16 = vector.load %arg5[%c0, %c0_4] : memref<8x128xf32, #tpu.memory_space<vmem>>, vector<8x128xf32>
    %17 = tpu.iota {dimensions = array<i32: 1>} : vector<8x128xi32>
    %c0_i32_5 = arith.constant 0 : i32
    %18 = arith.subi %3, %c0_i32_5 : i32
    %19 = vector.broadcast %18 : i32 to vector<8x128xi32>
    %20 = arith.addi %17, %19 : vector<8x128xi32>
    %cst = arith.constant 0.000000e+00 : f32
    %21 = vector.broadcast %cst : f32 to vector<8x128xf32>
    %cst_6 = arith.constant 0.000000e+00 : f32
    %22 = vector.broadcast %cst_6 : f32 to vector<8x128xf32>
    %cst_7 = arith.constant 0.000000e+00 : f32
    %23 = vector.broadcast %cst_7 : f32 to vector<8x128xf32>
    %cst_8 = arith.constant 0.000000e+00 : f32
    %24 = vector.broadcast %cst_8 : f32 to vector<8x128xf32>
    %cst_9 = arith.constant 0.000000e+00 : f32
    %25 = vector.broadcast %cst_9 : f32 to vector<8x128xf32>
    %c0_10 = arith.constant 0 : index
    %c0_11 = arith.constant 0 : index
    %c0_12 = arith.constant 0 : index
    %26 = vector.load %arg6[%c0_10, %c0_11, %c0_12] : memref<4x8x128xf32, #tpu.memory_space<vmem>>, vector<1x8x128xf32>
    %27 = vector.shape_cast %26 : vector<1x8x128xf32> to vector<8x128xf32>
    %c127_i32 = arith.constant 127 : i32
    %28 = tpu.dynamic_rotate %27 by %c127_i32 dim 1 : vector<8x128xf32>, i32 -> vector<8x128xf32>
    %29 = arith.subf %27, %28 : vector<8x128xf32>
    %30 = arith.mulf %29, %29 : vector<8x128xf32>
    %31 = arith.addf %21, %30 : vector<8x128xf32>
    %c126_i32 = arith.constant 126 : i32
    %32 = tpu.dynamic_rotate %27 by %c126_i32 dim 1 : vector<8x128xf32>, i32 -> vector<8x128xf32>
    %33 = arith.subf %27, %32 : vector<8x128xf32>
    %34 = arith.mulf %33, %33 : vector<8x128xf32>
    %35 = arith.addf %22, %34 : vector<8x128xf32>
    %c125_i32 = arith.constant 125 : i32
    %36 = tpu.dynamic_rotate %27 by %c125_i32 dim 1 : vector<8x128xf32>, i32 -> vector<8x128xf32>
    %37 = arith.subf %27, %36 : vector<8x128xf32>
    %38 = arith.mulf %37, %37 : vector<8x128xf32>
    %39 = arith.addf %23, %38 : vector<8x128xf32>
    %c124_i32 = arith.constant 124 : i32
    %40 = tpu.dynamic_rotate %27 by %c124_i32 dim 1 : vector<8x128xf32>, i32 -> vector<8x128xf32>
    %41 = arith.subf %27, %40 : vector<8x128xf32>
    %42 = arith.mulf %41, %41 : vector<8x128xf32>
    %43 = arith.addf %24, %42 : vector<8x128xf32>
    %c123_i32 = arith.constant 123 : i32
    %44 = tpu.dynamic_rotate %27 by %c123_i32 dim 1 : vector<8x128xf32>, i32 -> vector<8x128xf32>
    %45 = arith.subf %27, %44 : vector<8x128xf32>
    %46 = arith.mulf %45, %45 : vector<8x128xf32>
    %47 = arith.addf %25, %46 : vector<8x128xf32>
    %c1 = arith.constant 1 : index
    %c0_13 = arith.constant 0 : index
    %c0_14 = arith.constant 0 : index
    %48 = vector.load %arg6[%c1, %c0_13, %c0_14] : memref<4x8x128xf32, #tpu.memory_space<vmem>>, vector<1x8x128xf32>
    %49 = vector.shape_cast %48 : vector<1x8x128xf32> to vector<8x128xf32>
    %c127_i32_15 = arith.constant 127 : i32
    %50 = tpu.dynamic_rotate %49 by %c127_i32_15 dim 1 : vector<8x128xf32>, i32 -> vector<8x128xf32>
    %51 = arith.subf %49, %50 : vector<8x128xf32>
    %52 = arith.mulf %51, %51 : vector<8x128xf32>
    %53 = arith.addf %31, %52 : vector<8x128xf32>
    %c126_i32_16 = arith.constant 126 : i32
    %54 = tpu.dynamic_rotate %49 by %c126_i32_16 dim 1 : vector<8x128xf32>, i32 -> vector<8x128xf32>
    %55 = arith.subf %49, %54 : vector<8x128xf32>
    %56 = arith.mulf %55, %55 : vector<8x128xf32>
    %57 = arith.addf %35, %56 : vector<8x128xf32>
    %c125_i32_17 = arith.constant 125 : i32
    %58 = tpu.dynamic_rotate %49 by %c125_i32_17 dim 1 : vector<8x128xf32>, i32 -> vector<8x128xf32>
    %59 = arith.subf %49, %58 : vector<8x128xf32>
    %60 = arith.mulf %59, %59 : vector<8x128xf32>
    %61 = arith.addf %39, %60 : vector<8x128xf32>
    %c124_i32_18 = arith.constant 124 : i32
    %62 = tpu.dynamic_rotate %49 by %c124_i32_18 dim 1 : vector<8x128xf32>, i32 -> vector<8x128xf32>
    %63 = arith.subf %49, %62 : vector<8x128xf32>
    %64 = arith.mulf %63, %63 : vector<8x128xf32>
    %65 = arith.addf %43, %64 : vector<8x128xf32>
    %c123_i32_19 = arith.constant 123 : i32
    %66 = tpu.dynamic_rotate %49 by %c123_i32_19 dim 1 : vector<8x128xf32>, i32 -> vector<8x128xf32>
    %67 = arith.subf %49, %66 : vector<8x128xf32>
    %68 = arith.mulf %67, %67 : vector<8x128xf32>
    %69 = arith.addf %47, %68 : vector<8x128xf32>
    %c2 = arith.constant 2 : index
    %c0_20 = arith.constant 0 : index
    %c0_21 = arith.constant 0 : index
    %70 = vector.load %arg6[%c2, %c0_20, %c0_21] : memref<4x8x128xf32, #tpu.memory_space<vmem>>, vector<1x8x128xf32>
    %71 = vector.shape_cast %70 : vector<1x8x128xf32> to vector<8x128xf32>
    %c127_i32_22 = arith.constant 127 : i32
    %72 = tpu.dynamic_rotate %71 by %c127_i32_22 dim 1 : vector<8x128xf32>, i32 -> vector<8x128xf32>
    %73 = arith.subf %71, %72 : vector<8x128xf32>
    %74 = arith.mulf %73, %73 : vector<8x128xf32>
    %75 = arith.addf %53, %74 : vector<8x128xf32>
    %c126_i32_23 = arith.constant 126 : i32
    %76 = tpu.dynamic_rotate %71 by %c126_i32_23 dim 1 : vector<8x128xf32>, i32 -> vector<8x128xf32>
    %77 = arith.subf %71, %76 : vector<8x128xf32>
    %78 = arith.mulf %77, %77 : vector<8x128xf32>
    %79 = arith.addf %57, %78 : vector<8x128xf32>
    %c125_i32_24 = arith.constant 125 : i32
    %80 = tpu.dynamic_rotate %71 by %c125_i32_24 dim 1 : vector<8x128xf32>, i32 -> vector<8x128xf32>
    %81 = arith.subf %71, %80 : vector<8x128xf32>
    %82 = arith.mulf %81, %81 : vector<8x128xf32>
    %83 = arith.addf %61, %82 : vector<8x128xf32>
    %c124_i32_25 = arith.constant 124 : i32
    %84 = tpu.dynamic_rotate %71 by %c124_i32_25 dim 1 : vector<8x128xf32>, i32 -> vector<8x128xf32>
    %85 = arith.subf %71, %84 : vector<8x128xf32>
    %86 = arith.mulf %85, %85 : vector<8x128xf32>
    %87 = arith.addf %65, %86 : vector<8x128xf32>
    %c123_i32_26 = arith.constant 123 : i32
    %88 = tpu.dynamic_rotate %71 by %c123_i32_26 dim 1 : vector<8x128xf32>, i32 -> vector<8x128xf32>
    %89 = arith.subf %71, %88 : vector<8x128xf32>
    %90 = arith.mulf %89, %89 : vector<8x128xf32>
    %91 = arith.addf %69, %90 : vector<8x128xf32>
    %c3 = arith.constant 3 : index
    %c0_27 = arith.constant 0 : index
    %c0_28 = arith.constant 0 : index
    %92 = vector.load %arg6[%c3, %c0_27, %c0_28] : memref<4x8x128xf32, #tpu.memory_space<vmem>>, vector<1x8x128xf32>
    %93 = vector.shape_cast %92 : vector<1x8x128xf32> to vector<8x128xf32>
    %c127_i32_29 = arith.constant 127 : i32
    %94 = tpu.dynamic_rotate %93 by %c127_i32_29 dim 1 : vector<8x128xf32>, i32 -> vector<8x128xf32>
    %95 = arith.subf %93, %94 : vector<8x128xf32>
    %96 = arith.mulf %95, %95 : vector<8x128xf32>
    %97 = arith.addf %75, %96 : vector<8x128xf32>
    %c126_i32_30 = arith.constant 126 : i32
    %98 = tpu.dynamic_rotate %93 by %c126_i32_30 dim 1 : vector<8x128xf32>, i32 -> vector<8x128xf32>
    %99 = arith.subf %93, %98 : vector<8x128xf32>
    %100 = arith.mulf %99, %99 : vector<8x128xf32>
    %101 = arith.addf %79, %100 : vector<8x128xf32>
    %c125_i32_31 = arith.constant 125 : i32
    %102 = tpu.dynamic_rotate %93 by %c125_i32_31 dim 1 : vector<8x128xf32>, i32 -> vector<8x128xf32>
    %103 = arith.subf %93, %102 : vector<8x128xf32>
    %104 = arith.mulf %103, %103 : vector<8x128xf32>
    %105 = arith.addf %83, %104 : vector<8x128xf32>
    %c124_i32_32 = arith.constant 124 : i32
    %106 = tpu.dynamic_rotate %93 by %c124_i32_32 dim 1 : vector<8x128xf32>, i32 -> vector<8x128xf32>
    %107 = arith.subf %93, %106 : vector<8x128xf32>
    %108 = arith.mulf %107, %107 : vector<8x128xf32>
    %109 = arith.addf %87, %108 : vector<8x128xf32>
    %c123_i32_33 = arith.constant 123 : i32
    %110 = tpu.dynamic_rotate %93 by %c123_i32_33 dim 1 : vector<8x128xf32>, i32 -> vector<8x128xf32>
    %111 = arith.subf %93, %110 : vector<8x128xf32>
    %112 = arith.mulf %111, %111 : vector<8x128xf32>
    %113 = arith.addf %91, %112 : vector<8x128xf32>
    %cst_34 = arith.constant 0.000000e+00 : f32
    %114 = vector.broadcast %cst_34 : f32 to vector<8x128xf32>
    %c0_i32_35 = arith.constant 0 : i32
    %115 = vector.broadcast %c0_i32_35 : i32 to vector<8x128xi32>
    %116 = arith.cmpi sge, %20, %115 : vector<8x128xi32>
    %c1_i32_36 = arith.constant 1 : i32
    %117 = vector.broadcast %c1_i32_36 : i32 to vector<8x128xi32>
    %118 = arith.addi %20, %117 : vector<8x128xi32>
    %c16_i32 = arith.constant 16 : i32
    %119 = vector.broadcast %c16_i32 : i32 to vector<8x128xi32>
    %120 = arith.cmpi slt, %118, %119 : vector<8x128xi32>
    %121 = arith.andi %116, %120 : vector<8x128xi1>
    %cst_37 = arith.constant 0.000000e+00 : f32
    %122 = vector.broadcast %cst_37 : f32 to vector<8x128xf32>
    %123 = arith.subf %122, %97 : vector<8x128xf32>
    %cst_38 = arith.constant 5.000000e-01 : f32
    %124 = vector.broadcast %cst_38 : f32 to vector<8x128xf32>
    %125 = arith.mulf %123, %124 : vector<8x128xf32>
    %126 = math.exp %125 : vector<8x128xf32>
    %cst_39 = arith.constant 0.000000e+00 : f32
    %127 = vector.broadcast %cst_39 : f32 to vector<8x128xf32>
    %128 = arith.select %121, %126, %127 : vector<8x128xi1>, vector<8x128xf32>
    %129 = arith.addf %114, %128 : vector<8x128xf32>
    %c1_i32_40 = arith.constant 1 : i32
    %130 = tpu.dynamic_rotate %128 by %c1_i32_40 dim 1 : vector<8x128xf32>, i32 -> vector<8x128xf32>
    %131 = arith.addf %129, %130 : vector<8x128xf32>
    %cst_41 = arith.constant 2.000000e+00 : f32
    %132 = vector.broadcast %cst_41 : f32 to vector<8x128xf32>
    %133 = arith.mulf %132, %128 : vector<8x128xf32>
    %c0_i32_42 = arith.constant 0 : i32
    %134 = vector.broadcast %c0_i32_42 : i32 to vector<8x128xi32>
    %135 = arith.cmpi sge, %20, %134 : vector<8x128xi32>
    %c2_i32 = arith.constant 2 : i32
    %136 = vector.broadcast %c2_i32 : i32 to vector<8x128xi32>
    %137 = arith.addi %20, %136 : vector<8x128xi32>
    %c16_i32_43 = arith.constant 16 : i32
    %138 = vector.broadcast %c16_i32_43 : i32 to vector<8x128xi32>
    %139 = arith.cmpi slt, %137, %138 : vector<8x128xi32>
    %140 = arith.andi %135, %139 : vector<8x128xi1>
    %cst_44 = arith.constant 0.000000e+00 : f32
    %141 = vector.broadcast %cst_44 : f32 to vector<8x128xf32>
    %142 = arith.subf %141, %101 : vector<8x128xf32>
    %cst_45 = arith.constant 5.000000e-01 : f32
    %143 = vector.broadcast %cst_45 : f32 to vector<8x128xf32>
    %144 = arith.mulf %142, %143 : vector<8x128xf32>
    %145 = math.exp %144 : vector<8x128xf32>
    %cst_46 = arith.constant 0.000000e+00 : f32
    %146 = vector.broadcast %cst_46 : f32 to vector<8x128xf32>
    %147 = arith.select %140, %145, %146 : vector<8x128xi1>, vector<8x128xf32>
    %148 = arith.addf %131, %147 : vector<8x128xf32>
    %c2_i32_47 = arith.constant 2 : i32
    %149 = tpu.dynamic_rotate %147 by %c2_i32_47 dim 1 : vector<8x128xf32>, i32 -> vector<8x128xf32>
    %150 = arith.addf %148, %149 : vector<8x128xf32>
    %cst_48 = arith.constant 2.000000e+00 : f32
    %151 = vector.broadcast %cst_48 : f32 to vector<8x128xf32>
    %152 = arith.mulf %151, %147 : vector<8x128xf32>
    %c0_i32_49 = arith.constant 0 : i32
    %153 = vector.broadcast %c0_i32_49 : i32 to vector<8x128xi32>
    %154 = arith.cmpi sge, %20, %153 : vector<8x128xi32>
    %c3_i32 = arith.constant 3 : i32
    %155 = vector.broadcast %c3_i32 : i32 to vector<8x128xi32>
    %156 = arith.addi %20, %155 : vector<8x128xi32>
    %c16_i32_50 = arith.constant 16 : i32
    %157 = vector.broadcast %c16_i32_50 : i32 to vector<8x128xi32>
    %158 = arith.cmpi slt, %156, %157 : vector<8x128xi32>
    %159 = arith.andi %154, %158 : vector<8x128xi1>
    %cst_51 = arith.constant 0.000000e+00 : f32
    %160 = vector.broadcast %cst_51 : f32 to vector<8x128xf32>
    %161 = arith.subf %160, %105 : vector<8x128xf32>
    %cst_52 = arith.constant 5.000000e-01 : f32
    %162 = vector.broadcast %cst_52 : f32 to vector<8x128xf32>
    %163 = arith.mulf %161, %162 : vector<8x128xf32>
    %164 = math.exp %163 : vector<8x128xf32>
    %cst_53 = arith.constant 0.000000e+00 : f32
    %165 = vector.broadcast %cst_53 : f32 to vector<8x128xf32>
    %166 = arith.select %159, %164, %165 : vector<8x128xi1>, vector<8x128xf32>
    %167 = arith.addf %150, %166 : vector<8x128xf32>
    %c3_i32_54 = arith.constant 3 : i32
    %168 = tpu.dynamic_rotate %166 by %c3_i32_54 dim 1 : vector<8x128xf32>, i32 -> vector<8x128xf32>
    %169 = arith.addf %167, %168 : vector<8x128xf32>
    %cst_55 = arith.constant 2.000000e+00 : f32
    %170 = vector.broadcast %cst_55 : f32 to vector<8x128xf32>
    %171 = arith.mulf %170, %166 : vector<8x128xf32>
    %c0_i32_56 = arith.constant 0 : i32
    %172 = vector.broadcast %c0_i32_56 : i32 to vector<8x128xi32>
    %173 = arith.cmpi sge, %20, %172 : vector<8x128xi32>
    %c4_i32 = arith.constant 4 : i32
    %174 = vector.broadcast %c4_i32 : i32 to vector<8x128xi32>
    %175 = arith.addi %20, %174 : vector<8x128xi32>
    %c16_i32_57 = arith.constant 16 : i32
    %176 = vector.broadcast %c16_i32_57 : i32 to vector<8x128xi32>
    %177 = arith.cmpi slt, %175, %176 : vector<8x128xi32>
    %178 = arith.andi %173, %177 : vector<8x128xi1>
    %cst_58 = arith.constant 0.000000e+00 : f32
    %179 = vector.broadcast %cst_58 : f32 to vector<8x128xf32>
    %180 = arith.subf %179, %109 : vector<8x128xf32>
    %cst_59 = arith.constant 5.000000e-01 : f32
    %181 = vector.broadcast %cst_59 : f32 to vector<8x128xf32>
    %182 = arith.mulf %180, %181 : vector<8x128xf32>
    %183 = math.exp %182 : vector<8x128xf32>
    %cst_60 = arith.constant 0.000000e+00 : f32
    %184 = vector.broadcast %cst_60 : f32 to vector<8x128xf32>
    %185 = arith.select %178, %183, %184 : vector<8x128xi1>, vector<8x128xf32>
    %186 = arith.addf %169, %185 : vector<8x128xf32>
    %c4_i32_61 = arith.constant 4 : i32
    %187 = tpu.dynamic_rotate %185 by %c4_i32_61 dim 1 : vector<8x128xf32>, i32 -> vector<8x128xf32>
    %188 = arith.addf %186, %187 : vector<8x128xf32>
    %cst_62 = arith.constant 2.000000e+00 : f32
    %189 = vector.broadcast %cst_62 : f32 to vector<8x128xf32>
    %190 = arith.mulf %189, %185 : vector<8x128xf32>
    %c0_i32_63 = arith.constant 0 : i32
    %191 = vector.broadcast %c0_i32_63 : i32 to vector<8x128xi32>
    %192 = arith.cmpi sge, %20, %191 : vector<8x128xi32>
    %c5_i32 = arith.constant 5 : i32
    %193 = vector.broadcast %c5_i32 : i32 to vector<8x128xi32>
    %194 = arith.addi %20, %193 : vector<8x128xi32>
    %c16_i32_64 = arith.constant 16 : i32
    %195 = vector.broadcast %c16_i32_64 : i32 to vector<8x128xi32>
    %196 = arith.cmpi slt, %194, %195 : vector<8x128xi32>
    %197 = arith.andi %192, %196 : vector<8x128xi1>
    %cst_65 = arith.constant 0.000000e+00 : f32
    %198 = vector.broadcast %cst_65 : f32 to vector<8x128xf32>
    %199 = arith.subf %198, %113 : vector<8x128xf32>
    %cst_66 = arith.constant 5.000000e-01 : f32
    %200 = vector.broadcast %cst_66 : f32 to vector<8x128xf32>
    %201 = arith.mulf %199, %200 : vector<8x128xf32>
    %202 = math.exp %201 : vector<8x128xf32>
    %cst_67 = arith.constant 0.000000e+00 : f32
    %203 = vector.broadcast %cst_67 : f32 to vector<8x128xf32>
    %204 = arith.select %197, %202, %203 : vector<8x128xi1>, vector<8x128xf32>
    %205 = arith.addf %188, %204 : vector<8x128xf32>
    %c5_i32_68 = arith.constant 5 : i32
    %206 = tpu.dynamic_rotate %204 by %c5_i32_68 dim 1 : vector<8x128xf32>, i32 -> vector<8x128xf32>
    %207 = arith.addf %205, %206 : vector<8x128xf32>
    %cst_69 = arith.constant 2.000000e+00 : f32
    %208 = vector.broadcast %cst_69 : f32 to vector<8x128xf32>
    %209 = arith.mulf %208, %204 : vector<8x128xf32>
    %cst_70 = arith.constant 1.000000e+00 : f32
    %210 = vector.broadcast %cst_70 : f32 to vector<8x128xf32>
    %211 = arith.mulf %210, %207 : vector<8x128xf32>
    %212 = arith.subf %16, %211 : vector<8x128xf32>
    %cst_71 = arith.constant 5.000000e-01 : f32
    %213 = vector.broadcast %cst_71 : f32 to vector<8x128xf32>
    %214 = arith.mulf %213, %16 : vector<8x128xf32>
    %215 = math.tanh %214 : vector<8x128xf32>
    %cst_72 = arith.constant 5.000000e-01 : f32
    %216 = vector.broadcast %cst_72 : f32 to vector<8x128xf32>
    %217 = arith.mulf %216, %215 : vector<8x128xf32>
    %cst_73 = arith.constant 5.000000e-01 : f32
    %218 = vector.broadcast %cst_73 : f32 to vector<8x128xf32>
    %219 = arith.addf %218, %217 : vector<8x128xf32>
    %cst_74 = arith.constant 0.000000e+00 : f32
    %220 = vector.broadcast %cst_74 : f32 to vector<8x128xf32>
    %cst_75 = arith.constant 0.000000e+00 : f32
    %221 = vector.broadcast %cst_75 : f32 to vector<8x128xf32>
    %c127_i32_76 = arith.constant 127 : i32
    %222 = tpu.dynamic_rotate %219 by %c127_i32_76 dim 1 : vector<8x128xf32>, i32 -> vector<8x128xf32>
    %223 = arith.mulf %133, %222 : vector<8x128xf32>
    %224 = arith.addf %220, %223 : vector<8x128xf32>
    %225 = arith.mulf %133, %219 : vector<8x128xf32>
    %c1_i32_77 = arith.constant 1 : i32
    %226 = tpu.dynamic_rotate %225 by %c1_i32_77 dim 1 : vector<8x128xf32>, i32 -> vector<8x128xf32>
    %227 = arith.addf %221, %226 : vector<8x128xf32>
    %c126_i32_78 = arith.constant 126 : i32
    %228 = tpu.dynamic_rotate %219 by %c126_i32_78 dim 1 : vector<8x128xf32>, i32 -> vector<8x128xf32>
    %229 = arith.mulf %152, %228 : vector<8x128xf32>
    %230 = arith.addf %224, %229 : vector<8x128xf32>
    %231 = arith.mulf %152, %219 : vector<8x128xf32>
    %c2_i32_79 = arith.constant 2 : i32
    %232 = tpu.dynamic_rotate %231 by %c2_i32_79 dim 1 : vector<8x128xf32>, i32 -> vector<8x128xf32>
    %233 = arith.addf %227, %232 : vector<8x128xf32>
    %c125_i32_80 = arith.constant 125 : i32
    %234 = tpu.dynamic_rotate %219 by %c125_i32_80 dim 1 : vector<8x128xf32>, i32 -> vector<8x128xf32>
    %235 = arith.mulf %171, %234 : vector<8x128xf32>
    %236 = arith.addf %230, %235 : vector<8x128xf32>
    %237 = arith.mulf %171, %219 : vector<8x128xf32>
    %c3_i32_81 = arith.constant 3 : i32
    %238 = tpu.dynamic_rotate %237 by %c3_i32_81 dim 1 : vector<8x128xf32>, i32 -> vector<8x128xf32>
    %239 = arith.addf %233, %238 : vector<8x128xf32>
    %c124_i32_82 = arith.constant 124 : i32
    %240 = tpu.dynamic_rotate %219 by %c124_i32_82 dim 1 : vector<8x128xf32>, i32 -> vector<8x128xf32>
    %241 = arith.mulf %190, %240 : vector<8x128xf32>
    %242 = arith.addf %236, %241 : vector<8x128xf32>
    %243 = arith.mulf %190, %219 : vector<8x128xf32>
    %c4_i32_83 = arith.constant 4 : i32
    %244 = tpu.dynamic_rotate %243 by %c4_i32_83 dim 1 : vector<8x128xf32>, i32 -> vector<8x128xf32>
    %245 = arith.addf %239, %244 : vector<8x128xf32>
    %c123_i32_84 = arith.constant 123 : i32
    %246 = tpu.dynamic_rotate %219 by %c123_i32_84 dim 1 : vector<8x128xf32>, i32 -> vector<8x128xf32>
    %247 = arith.mulf %209, %246 : vector<8x128xf32>
    %248 = arith.addf %242, %247 : vector<8x128xf32>
    %249 = arith.mulf %209, %219 : vector<8x128xf32>
    %c5_i32_85 = arith.constant 5 : i32
    %250 = tpu.dynamic_rotate %249 by %c5_i32_85 dim 1 : vector<8x128xf32>, i32 -> vector<8x128xf32>
    %251 = arith.addf %245, %250 : vector<8x128xf32>
    %252 = arith.addf %248, %251 : vector<8x128xf32>
    %253 = arith.addf %212, %252 : vector<8x128xf32>
    %cst_86 = arith.constant 5.000000e-01 : f32
    %254 = vector.broadcast %cst_86 : f32 to vector<8x128xf32>
    %255 = arith.mulf %254, %253 : vector<8x128xf32>
    %256 = math.tanh %255 : vector<8x128xf32>
    %cst_87 = arith.constant 5.000000e-01 : f32
    %257 = vector.broadcast %cst_87 : f32 to vector<8x128xf32>
    %258 = arith.mulf %257, %256 : vector<8x128xf32>
    %cst_88 = arith.constant 5.000000e-01 : f32
    %259 = vector.broadcast %cst_88 : f32 to vector<8x128xf32>
    %260 = arith.addf %259, %258 : vector<8x128xf32>
    %cst_89 = arith.constant 0.000000e+00 : f32
    %261 = vector.broadcast %cst_89 : f32 to vector<8x128xf32>
    %cst_90 = arith.constant 0.000000e+00 : f32
    %262 = vector.broadcast %cst_90 : f32 to vector<8x128xf32>
    %c127_i32_91 = arith.constant 127 : i32
    %263 = tpu.dynamic_rotate %260 by %c127_i32_91 dim 1 : vector<8x128xf32>, i32 -> vector<8x128xf32>
    %264 = arith.mulf %133, %263 : vector<8x128xf32>
    %265 = arith.addf %261, %264 : vector<8x128xf32>
    %266 = arith.mulf %133, %260 : vector<8x128xf32>
    %c1_i32_92 = arith.constant 1 : i32
    %267 = tpu.dynamic_rotate %266 by %c1_i32_92 dim 1 : vector<8x128xf32>, i32 -> vector<8x128xf32>
    %268 = arith.addf %262, %267 : vector<8x128xf32>
    %c126_i32_93 = arith.constant 126 : i32
    %269 = tpu.dynamic_rotate %260 by %c126_i32_93 dim 1 : vector<8x128xf32>, i32 -> vector<8x128xf32>
    %270 = arith.mulf %152, %269 : vector<8x128xf32>
    %271 = arith.addf %265, %270 : vector<8x128xf32>
    %272 = arith.mulf %152, %260 : vector<8x128xf32>
    %c2_i32_94 = arith.constant 2 : i32
    %273 = tpu.dynamic_rotate %272 by %c2_i32_94 dim 1 : vector<8x128xf32>, i32 -> vector<8x128xf32>
    %274 = arith.addf %268, %273 : vector<8x128xf32>
    %c125_i32_95 = arith.constant 125 : i32
    %275 = tpu.dynamic_rotate %260 by %c125_i32_95 dim 1 : vector<8x128xf32>, i32 -> vector<8x128xf32>
    %276 = arith.mulf %171, %275 : vector<8x128xf32>
    %277 = arith.addf %271, %276 : vector<8x128xf32>
    %278 = arith.mulf %171, %260 : vector<8x128xf32>
    %c3_i32_96 = arith.constant 3 : i32
    %279 = tpu.dynamic_rotate %278 by %c3_i32_96 dim 1 : vector<8x128xf32>, i32 -> vector<8x128xf32>
    %280 = arith.addf %274, %279 : vector<8x128xf32>
    %c124_i32_97 = arith.constant 124 : i32
    %281 = tpu.dynamic_rotate %260 by %c124_i32_97 dim 1 : vector<8x128xf32>, i32 -> vector<8x128xf32>
    %282 = arith.mulf %190, %281 : vector<8x128xf32>
    %283 = arith.addf %277, %282 : vector<8x128xf32>
    %284 = arith.mulf %190, %260 : vector<8x128xf32>
    %c4_i32_98 = arith.constant 4 : i32
    %285 = tpu.dynamic_rotate %284 by %c4_i32_98 dim 1 : vector<8x128xf32>, i32 -> vector<8x128xf32>
    %286 = arith.addf %280, %285 : vector<8x128xf32>
    %c123_i32_99 = arith.constant 123 : i32
    %287 = tpu.dynamic_rotate %260 by %c123_i32_99 dim 1 : vector<8x128xf32>, i32 -> vector<8x128xf32>
    %288 = arith.mulf %209, %287 : vector<8x128xf32>
    %289 = arith.addf %283, %288 : vector<8x128xf32>
    %290 = arith.mulf %209, %260 : vector<8x128xf32>
    %c5_i32_100 = arith.constant 5 : i32
    %291 = tpu.dynamic_rotate %290 by %c5_i32_100 dim 1 : vector<8x128xf32>, i32 -> vector<8x128xf32>
    %292 = arith.addf %286, %291 : vector<8x128xf32>
    %293 = arith.addf %289, %292 : vector<8x128xf32>
    %294 = arith.addf %212, %293 : vector<8x128xf32>
    %cst_101 = arith.constant 5.000000e-01 : f32
    %295 = vector.broadcast %cst_101 : f32 to vector<8x128xf32>
    %296 = arith.mulf %295, %294 : vector<8x128xf32>
    %297 = math.tanh %296 : vector<8x128xf32>
    %cst_102 = arith.constant 5.000000e-01 : f32
    %298 = vector.broadcast %cst_102 : f32 to vector<8x128xf32>
    %299 = arith.mulf %298, %297 : vector<8x128xf32>
    %cst_103 = arith.constant 5.000000e-01 : f32
    %300 = vector.broadcast %cst_103 : f32 to vector<8x128xf32>
    %301 = arith.addf %300, %299 : vector<8x128xf32>
    %cst_104 = arith.constant 0.000000e+00 : f32
    %302 = vector.broadcast %cst_104 : f32 to vector<8x128xf32>
    %cst_105 = arith.constant 0.000000e+00 : f32
    %303 = vector.broadcast %cst_105 : f32 to vector<8x128xf32>
    %c127_i32_106 = arith.constant 127 : i32
    %304 = tpu.dynamic_rotate %301 by %c127_i32_106 dim 1 : vector<8x128xf32>, i32 -> vector<8x128xf32>
    %305 = arith.mulf %133, %304 : vector<8x128xf32>
    %306 = arith.addf %302, %305 : vector<8x128xf32>
    %307 = arith.mulf %133, %301 : vector<8x128xf32>
    %c1_i32_107 = arith.constant 1 : i32
    %308 = tpu.dynamic_rotate %307 by %c1_i32_107 dim 1 : vector<8x128xf32>, i32 -> vector<8x128xf32>
    %309 = arith.addf %303, %308 : vector<8x128xf32>
    %c126_i32_108 = arith.constant 126 : i32
    %310 = tpu.dynamic_rotate %301 by %c126_i32_108 dim 1 : vector<8x128xf32>, i32 -> vector<8x128xf32>
    %311 = arith.mulf %152, %310 : vector<8x128xf32>
    %312 = arith.addf %306, %311 : vector<8x128xf32>
    %313 = arith.mulf %152, %301 : vector<8x128xf32>
    %c2_i32_109 = arith.constant 2 : i32
    %314 = tpu.dynamic_rotate %313 by %c2_i32_109 dim 1 : vector<8x128xf32>, i32 -> vector<8x128xf32>
    %315 = arith.addf %309, %314 : vector<8x128xf32>
    %c125_i32_110 = arith.constant 125 : i32
    %316 = tpu.dynamic_rotate %301 by %c125_i32_110 dim 1 : vector<8x128xf32>, i32 -> vector<8x128xf32>
    %317 = arith.mulf %171, %316 : vector<8x128xf32>
    %318 = arith.addf %312, %317 : vector<8x128xf32>
    %319 = arith.mulf %171, %301 : vector<8x128xf32>
    %c3_i32_111 = arith.constant 3 : i32
    %320 = tpu.dynamic_rotate %319 by %c3_i32_111 dim 1 : vector<8x128xf32>, i32 -> vector<8x128xf32>
    %321 = arith.addf %315, %320 : vector<8x128xf32>
    %c124_i32_112 = arith.constant 124 : i32
    %322 = tpu.dynamic_rotate %301 by %c124_i32_112 dim 1 : vector<8x128xf32>, i32 -> vector<8x128xf32>
    %323 = arith.mulf %190, %322 : vector<8x128xf32>
    %324 = arith.addf %318, %323 : vector<8x128xf32>
    %325 = arith.mulf %190, %301 : vector<8x128xf32>
    %c4_i32_113 = arith.constant 4 : i32
    %326 = tpu.dynamic_rotate %325 by %c4_i32_113 dim 1 : vector<8x128xf32>, i32 -> vector<8x128xf32>
    %327 = arith.addf %321, %326 : vector<8x128xf32>
    %c123_i32_114 = arith.constant 123 : i32
    %328 = tpu.dynamic_rotate %301 by %c123_i32_114 dim 1 : vector<8x128xf32>, i32 -> vector<8x128xf32>
    %329 = arith.mulf %209, %328 : vector<8x128xf32>
    %330 = arith.addf %324, %329 : vector<8x128xf32>
    %331 = arith.mulf %209, %301 : vector<8x128xf32>
    %c5_i32_115 = arith.constant 5 : i32
    %332 = tpu.dynamic_rotate %331 by %c5_i32_115 dim 1 : vector<8x128xf32>, i32 -> vector<8x128xf32>
    %333 = arith.addf %327, %332 : vector<8x128xf32>
    %334 = arith.addf %330, %333 : vector<8x128xf32>
    %335 = arith.addf %212, %334 : vector<8x128xf32>
    %cst_116 = arith.constant 5.000000e-01 : f32
    %336 = vector.broadcast %cst_116 : f32 to vector<8x128xf32>
    %337 = arith.mulf %336, %335 : vector<8x128xf32>
    %338 = math.tanh %337 : vector<8x128xf32>
    %cst_117 = arith.constant 5.000000e-01 : f32
    %339 = vector.broadcast %cst_117 : f32 to vector<8x128xf32>
    %340 = arith.mulf %339, %338 : vector<8x128xf32>
    %cst_118 = arith.constant 5.000000e-01 : f32
    %341 = vector.broadcast %cst_118 : f32 to vector<8x128xf32>
    %342 = arith.addf %341, %340 : vector<8x128xf32>
    %cst_119 = arith.constant 0.000000e+00 : f32
    %343 = vector.broadcast %cst_119 : f32 to vector<8x128xf32>
    %cst_120 = arith.constant 0.000000e+00 : f32
    %344 = vector.broadcast %cst_120 : f32 to vector<8x128xf32>
    %c127_i32_121 = arith.constant 127 : i32
    %345 = tpu.dynamic_rotate %342 by %c127_i32_121 dim 1 : vector<8x128xf32>, i32 -> vector<8x128xf32>
    %346 = arith.mulf %133, %345 : vector<8x128xf32>
    %347 = arith.addf %343, %346 : vector<8x128xf32>
    %348 = arith.mulf %133, %342 : vector<8x128xf32>
    %c1_i32_122 = arith.constant 1 : i32
    %349 = tpu.dynamic_rotate %348 by %c1_i32_122 dim 1 : vector<8x128xf32>, i32 -> vector<8x128xf32>
    %350 = arith.addf %344, %349 : vector<8x128xf32>
    %c126_i32_123 = arith.constant 126 : i32
    %351 = tpu.dynamic_rotate %342 by %c126_i32_123 dim 1 : vector<8x128xf32>, i32 -> vector<8x128xf32>
    %352 = arith.mulf %152, %351 : vector<8x128xf32>
    %353 = arith.addf %347, %352 : vector<8x128xf32>
    %354 = arith.mulf %152, %342 : vector<8x128xf32>
    %c2_i32_124 = arith.constant 2 : i32
    %355 = tpu.dynamic_rotate %354 by %c2_i32_124 dim 1 : vector<8x128xf32>, i32 -> vector<8x128xf32>
    %356 = arith.addf %350, %355 : vector<8x128xf32>
    %c125_i32_125 = arith.constant 125 : i32
    %357 = tpu.dynamic_rotate %342 by %c125_i32_125 dim 1 : vector<8x128xf32>, i32 -> vector<8x128xf32>
    %358 = arith.mulf %171, %357 : vector<8x128xf32>
    %359 = arith.addf %353, %358 : vector<8x128xf32>
    %360 = arith.mulf %171, %342 : vector<8x128xf32>
    %c3_i32_126 = arith.constant 3 : i32
    %361 = tpu.dynamic_rotate %360 by %c3_i32_126 dim 1 : vector<8x128xf32>, i32 -> vector<8x128xf32>
    %362 = arith.addf %356, %361 : vector<8x128xf32>
    %c124_i32_127 = arith.constant 124 : i32
    %363 = tpu.dynamic_rotate %342 by %c124_i32_127 dim 1 : vector<8x128xf32>, i32 -> vector<8x128xf32>
    %364 = arith.mulf %190, %363 : vector<8x128xf32>
    %365 = arith.addf %359, %364 : vector<8x128xf32>
    %366 = arith.mulf %190, %342 : vector<8x128xf32>
    %c4_i32_128 = arith.constant 4 : i32
    %367 = tpu.dynamic_rotate %366 by %c4_i32_128 dim 1 : vector<8x128xf32>, i32 -> vector<8x128xf32>
    %368 = arith.addf %362, %367 : vector<8x128xf32>
    %c123_i32_129 = arith.constant 123 : i32
    %369 = tpu.dynamic_rotate %342 by %c123_i32_129 dim 1 : vector<8x128xf32>, i32 -> vector<8x128xf32>
    %370 = arith.mulf %209, %369 : vector<8x128xf32>
    %371 = arith.addf %365, %370 : vector<8x128xf32>
    %372 = arith.mulf %209, %342 : vector<8x128xf32>
    %c5_i32_130 = arith.constant 5 : i32
    %373 = tpu.dynamic_rotate %372 by %c5_i32_130 dim 1 : vector<8x128xf32>, i32 -> vector<8x128xf32>
    %374 = arith.addf %368, %373 : vector<8x128xf32>
    %375 = arith.addf %371, %374 : vector<8x128xf32>
    %376 = arith.addf %212, %375 : vector<8x128xf32>
    %cst_131 = arith.constant 5.000000e-01 : f32
    %377 = vector.broadcast %cst_131 : f32 to vector<8x128xf32>
    %378 = arith.mulf %377, %376 : vector<8x128xf32>
    %379 = math.tanh %378 : vector<8x128xf32>
    %cst_132 = arith.constant 5.000000e-01 : f32
    %380 = vector.broadcast %cst_132 : f32 to vector<8x128xf32>
    %381 = arith.mulf %380, %379 : vector<8x128xf32>
    %cst_133 = arith.constant 5.000000e-01 : f32
    %382 = vector.broadcast %cst_133 : f32 to vector<8x128xf32>
    %383 = arith.addf %382, %381 : vector<8x128xf32>
    %cst_134 = arith.constant 0.000000e+00 : f32
    %384 = vector.broadcast %cst_134 : f32 to vector<8x128xf32>
    %cst_135 = arith.constant 0.000000e+00 : f32
    %385 = vector.broadcast %cst_135 : f32 to vector<8x128xf32>
    %c127_i32_136 = arith.constant 127 : i32
    %386 = tpu.dynamic_rotate %383 by %c127_i32_136 dim 1 : vector<8x128xf32>, i32 -> vector<8x128xf32>
    %387 = arith.mulf %133, %386 : vector<8x128xf32>
    %388 = arith.addf %384, %387 : vector<8x128xf32>
    %389 = arith.mulf %133, %383 : vector<8x128xf32>
    %c1_i32_137 = arith.constant 1 : i32
    %390 = tpu.dynamic_rotate %389 by %c1_i32_137 dim 1 : vector<8x128xf32>, i32 -> vector<8x128xf32>
    %391 = arith.addf %385, %390 : vector<8x128xf32>
    %c126_i32_138 = arith.constant 126 : i32
    %392 = tpu.dynamic_rotate %383 by %c126_i32_138 dim 1 : vector<8x128xf32>, i32 -> vector<8x128xf32>
    %393 = arith.mulf %152, %392 : vector<8x128xf32>
    %394 = arith.addf %388, %393 : vector<8x128xf32>
    %395 = arith.mulf %152, %383 : vector<8x128xf32>
    %c2_i32_139 = arith.constant 2 : i32
    %396 = tpu.dynamic_rotate %395 by %c2_i32_139 dim 1 : vector<8x128xf32>, i32 -> vector<8x128xf32>
    %397 = arith.addf %391, %396 : vector<8x128xf32>
    %c125_i32_140 = arith.constant 125 : i32
    %398 = tpu.dynamic_rotate %383 by %c125_i32_140 dim 1 : vector<8x128xf32>, i32 -> vector<8x128xf32>
    %399 = arith.mulf %171, %398 : vector<8x128xf32>
    %400 = arith.addf %394, %399 : vector<8x128xf32>
    %401 = arith.mulf %171, %383 : vector<8x128xf32>
    %c3_i32_141 = arith.constant 3 : i32
    %402 = tpu.dynamic_rotate %401 by %c3_i32_141 dim 1 : vector<8x128xf32>, i32 -> vector<8x128xf32>
    %403 = arith.addf %397, %402 : vector<8x128xf32>
    %c124_i32_142 = arith.constant 124 : i32
    %404 = tpu.dynamic_rotate %383 by %c124_i32_142 dim 1 : vector<8x128xf32>, i32 -> vector<8x128xf32>
    %405 = arith.mulf %190, %404 : vector<8x128xf32>
    %406 = arith.addf %400, %405 : vector<8x128xf32>
    %407 = arith.mulf %190, %383 : vector<8x128xf32>
    %c4_i32_143 = arith.constant 4 : i32
    %408 = tpu.dynamic_rotate %407 by %c4_i32_143 dim 1 : vector<8x128xf32>, i32 -> vector<8x128xf32>
    %409 = arith.addf %403, %408 : vector<8x128xf32>
    %c123_i32_144 = arith.constant 123 : i32
    %410 = tpu.dynamic_rotate %383 by %c123_i32_144 dim 1 : vector<8x128xf32>, i32 -> vector<8x128xf32>
    %411 = arith.mulf %209, %410 : vector<8x128xf32>
    %412 = arith.addf %406, %411 : vector<8x128xf32>
    %413 = arith.mulf %209, %383 : vector<8x128xf32>
    %c5_i32_145 = arith.constant 5 : i32
    %414 = tpu.dynamic_rotate %413 by %c5_i32_145 dim 1 : vector<8x128xf32>, i32 -> vector<8x128xf32>
    %415 = arith.addf %409, %414 : vector<8x128xf32>
    %416 = arith.addf %412, %415 : vector<8x128xf32>
    %417 = arith.addf %212, %416 : vector<8x128xf32>
    %cst_146 = arith.constant 5.000000e-01 : f32
    %418 = vector.broadcast %cst_146 : f32 to vector<8x128xf32>
    %419 = arith.mulf %418, %417 : vector<8x128xf32>
    %420 = math.tanh %419 : vector<8x128xf32>
    %cst_147 = arith.constant 5.000000e-01 : f32
    %421 = vector.broadcast %cst_147 : f32 to vector<8x128xf32>
    %422 = arith.mulf %421, %420 : vector<8x128xf32>
    %cst_148 = arith.constant 5.000000e-01 : f32
    %423 = vector.broadcast %cst_148 : f32 to vector<8x128xf32>
    %424 = arith.addf %423, %422 : vector<8x128xf32>
    %c0_149 = arith.constant 0 : index
    %c0_150 = arith.constant 0 : index
    %425 = vector.load %arg4[%c0_149, %c0_150] : memref<8x128xf32, #tpu.memory_space<vmem>>, vector<8x128xf32>
    tpu.vector_store %arg4[%c0_149, %c0_150], %424 {strides = array<i32>} : memref<8x128xf32, #tpu.memory_space<vmem>>, vector<8x128xf32>,
    return
  }
  func.func @transform_2(%arg0: i32, %arg1: i32) -> (i32, i32) {
    %c0_i32 = arith.constant 0 : i32
    return %arg0, %arg1 : i32, i32
  }
}

</mosaic_0001>

<llo_original>
// kernel: tpu_custom_call.1
$region0: #{tpu_custom_call.1}
  #allocation0 [shape = 'u32[]', space=smem, size = 0x4, offset = 0x4, fixed_abs, tag = 'smem constant byte address 0x4 - core index']
  #allocation1 [shape = 'u32[144,128]{1,0:T(1,128)}', space=vmem, size = 0x12000, scoped, tag = 'internal scratch']
  #allocation2 [shape = 'f32[8,128]{1,0:T(8,128)}', space=vmem, size = 0x1000, scoped, tag = 'scratch operand']
  #allocation3 [shape = 'f32[4,8,128]{2,1,0:T(8,128)}', space=vmem, size = 0x4000, scoped, tag = 'scratch operand']
  #allocation4 [shape = 's32[2]{0}', space=sflag, size = 0x8, scoped, tag = 'scratch operand']
  #allocation7 [shape = 's32[]', space=sflag, size = 0x4, offset = 0, fixed_abs, tag = 'sflag constant byte address 0x0 - dummy sync flag']
  #allocation8 [shape = 's32[]', space=sflag, size = 0x4, offset = 0, fixed_abs, tag = 'sflag constant byte address 0x0 - dummy sync flag']
  #allocation9 [shape = 'u32[]', space=smem, size = 0x4, offset = 0x44, fixed_abs, tag = 'smem constant byte address 0x44 - assertion arg 0']
  #allocation10 [shape = 'u32[]', space=smem, size = 0x4, offset = 0x48, fixed_abs, tag = 'smem constant byte address 0x48 - assertion arg 1']
  #allocation11 [shape = 's32[]', space=sflag, size = 0x4, offset = 0, fixed_abs, tag = 'sflag constant byte address 0x0 - dummy sync flag']
  #allocation12 [shape = 's32[]', space=sflag, size = 0x4, offset = 0, fixed_abs, tag = 'sflag constant byte address 0x0 - dummy sync flag']
  %s0 = inlined_call_operand.hbm [shape: f32[8,128], index: 0, kind: input, shape index: {}]
  %s1 = inlined_call_operand.hbm [shape: f32[4,8,128], index: 1, kind: input, shape index: {}]
  %s2 = inlined_call_operand.hbm [shape: f32[8,128], index: 2, kind: output, shape index: {}]
  %s3 = sld [smem:[#allocation0]]
  $region18: #{tpu_custom_call.1} parent=0
    _
  %s5 = ssub.s32 1, %s3
  %s6 = scalar_select 0, %s5, %s3
  $region1: #{tpu_custom_call.1} parent=0
    #allocation5 [shape = 'u8[4096]{0}', space=vmem, size = 0x1000, scoped, tag = 'output window, operand 0, single buffered']
    #allocation6 [shape = 's32[1]{0}', space=sflag, size = 0x4, scoped, tag = 'scoped memory for tpu_custom_call.1']
    %7 = vsyncpa [#allocation6], 0
    %s8 = smul.u32 0, 8
    %s9 = smul.u32 0, 128
    %s10 = sshra.s32 %s9, 7
    %s11 = sand.u32 %s9, 127
    %s12 = sadd.s32 %s10, %s8
    %s13 = smul.addr %s12, 16
    %s14 = scalar_lea.hbm %s0, %s13
    // Predicated region
    $region2: #{tpu_custom_call.1} parent=1 // pred_check
      _
    $region3: #{tpu_custom_call.1} parent=1 // pred_check_branch
      %16 = sbr.rel target = $region5
    $region4: #{tpu_custom_call.1} parent=1 // pred_region
      %17 = sst [smem:[#allocation9]] [#allocation8]
      %18 = sst [smem:[#allocation10]] [#allocation7]
    $region5: #{tpu_custom_call.1} parent=1 // pred_fallthru
      _
    %20 = shalt.err (0)
    %s22 = sshll.u32 [#allocation2], 4
    %s23 = int_to_ptr.vmem [resolvable:$true] %s22
    %25 = dma.hbm_to_vmem [thread:$0]  %s14, 128, %s23, [#allocation4]
    %s26 = smul.addr %s12, 16
    %s27 = scalar_lea.hbm %s1, %s26
    %s28 = scalar_lea.sflag [#allocation4], 1
    // Predicated region
    $region6: #{tpu_custom_call.1} parent=1 // pred_check
      _
    $region7: #{tpu_custom_call.1} parent=1 // pred_check_branch
      %30 = sbr.rel target = $region9
    $region8: #{tpu_custom_call.1} parent=1 // pred_region
      %31 = sst [smem:[#allocation9]] [#allocation12]
      %32 = sst [smem:[#allocation10]] [#allocation11]
    $region9: #{tpu_custom_call.1} parent=1 // pred_fallthru
      _
    %34 = shalt.err (0)
    %s36 = sshll.u32 [#allocation3], 4
    %s37 = int_to_ptr.vmem [resolvable:$true] %s36
    %39 = dma.hbm_to_vmem [thread:$0]  %s27, 512, %s37, %s28
    %s40 = smul.u32 8, 1
    %s41 = sshll.u32 %s40, 4
    %42 = dma.done [#allocation4], %s41
    %s43 = smul.u32 4, 8
    %s44 = smul.u32 %s43, 1
    %s45 = sshll.u32 %s44, 4
    %46 = dma.done %s28, %s45
    %v47 = vld [vmem:[#allocation2] sm:$0xff]
    %v48 = vlaneseq
    %v49 = vand.u32 %v48, 127
    %v50 = vstv %s9
    %v51 = vadd.s32 %v49, %v50
    %v52 = vld [vmem:[#allocation3] sm:$0xff]
    %53 = vrot.lane.b32.xlu0 %v52, 127
    %v54 = vpop.permute.xlu0 %53
    %v55 = vsub.f32 %v52, %v54
    %v56 = vmul.f32 %v55, %v55
    %v57 = vadd.f32 %v56, 0.0
    %58 = vrot.lane.b32.xlu0 %v52, 126
    %v59 = vpop.permute.xlu0 %58
    %v60 = vsub.f32 %v52, %v59
    %v61 = vmul.f32 %v60, %v60
    %v62 = vadd.f32 %v61, 0.0
    %63 = vrot.lane.b32.xlu0 %v52, 125
    %v64 = vpop.permute.xlu0 %63
    %v65 = vsub.f32 %v52, %v64
    %v66 = vmul.f32 %v65, %v65
    %v67 = vadd.f32 %v66, 0.0
    %68 = vrot.lane.b32.xlu0 %v52, 124
    %v69 = vpop.permute.xlu0 %68
    %v70 = vsub.f32 %v52, %v69
    %v71 = vmul.f32 %v70, %v70
    %v72 = vadd.f32 %v71, 0.0
    %73 = vrot.lane.b32.xlu0 %v52, 123
    %v74 = vpop.permute.xlu0 %73
    %v75 = vsub.f32 %v52, %v74
    %v76 = vmul.f32 %v75, %v75
    %v77 = vadd.f32 %v76, 0.0
    %s78 = scalar_lea.vmem [#allocation3], 8
    %v79 = vld [vmem:[%s78] sm:$0xff]
    %80 = vrot.lane.b32.xlu0 %v79, 127
    %v81 = vpop.permute.xlu0 %80
    %v82 = vsub.f32 %v79, %v81
    %v83 = vmul.f32 %v82, %v82
    %v84 = vadd.f32 %v57, %v83
    %85 = vrot.lane.b32.xlu0 %v79, 126
    %v86 = vpop.permute.xlu0 %85
    %v87 = vsub.f32 %v79, %v86
    %v88 = vmul.f32 %v87, %v87
    %v89 = vadd.f32 %v62, %v88
    %90 = vrot.lane.b32.xlu0 %v79, 125
    %v91 = vpop.permute.xlu0 %90
    %v92 = vsub.f32 %v79, %v91
    %v93 = vmul.f32 %v92, %v92
    %v94 = vadd.f32 %v67, %v93
    %95 = vrot.lane.b32.xlu0 %v79, 124
    %v96 = vpop.permute.xlu0 %95
    %v97 = vsub.f32 %v79, %v96
    %v98 = vmul.f32 %v97, %v97
    %v99 = vadd.f32 %v72, %v98
    %100 = vrot.lane.b32.xlu0 %v79, 123
    %v101 = vpop.permute.xlu0 %100
    %v102 = vsub.f32 %v79, %v101
    %v103 = vmul.f32 %v102, %v102
    %v104 = vadd.f32 %v77, %v103
    %s105 = scalar_lea.vmem [#allocation3], 16
    %v106 = vld [vmem:[%s105] sm:$0xff]
    %107 = vrot.lane.b32.xlu0 %v106, 127
    %v108 = vpop.permute.xlu0 %107
    %v109 = vsub.f32 %v106, %v108
    %v110 = vmul.f32 %v109, %v109
    %v111 = vadd.f32 %v84, %v110
    %112 = vrot.lane.b32.xlu0 %v106, 126
    %v113 = vpop.permute.xlu0 %112
    %v114 = vsub.f32 %v106, %v113
    %v115 = vmul.f32 %v114, %v114
    %v116 = vadd.f32 %v89, %v115
    %117 = vrot.lane.b32.xlu0 %v106, 125
    %v118 = vpop.permute.xlu0 %117
    %v119 = vsub.f32 %v106, %v118
    %v120 = vmul.f32 %v119, %v119
    %v121 = vadd.f32 %v94, %v120
    %122 = vrot.lane.b32.xlu0 %v106, 124
    %v123 = vpop.permute.xlu0 %122
    %v124 = vsub.f32 %v106, %v123
    %v125 = vmul.f32 %v124, %v124
    %v126 = vadd.f32 %v99, %v125
    %127 = vrot.lane.b32.xlu0 %v106, 123
    %v128 = vpop.permute.xlu0 %127
    %v129 = vsub.f32 %v106, %v128
    %v130 = vmul.f32 %v129, %v129
    %v131 = vadd.f32 %v104, %v130
    %s132 = scalar_lea.vmem [#allocation3], 24
    %v133 = vld [vmem:[%s132] sm:$0xff]
    %134 = vrot.lane.b32.xlu0 %v133, 127
    %v135 = vpop.permute.xlu0 %134
    %v136 = vsub.f32 %v133, %v135
    %v137 = vmul.f32 %v136, %v136
    %v138 = vadd.f32 %v111, %v137
    %139 = vrot.lane.b32.xlu0 %v133, 126
    %v140 = vpop.permute.xlu0 %139
    %v141 = vsub.f32 %v133, %v140
    %v142 = vmul.f32 %v141, %v141
    %v143 = vadd.f32 %v116, %v142
    %144 = vrot.lane.b32.xlu0 %v133, 125
    %v145 = vpop.permute.xlu0 %144
    %v146 = vsub.f32 %v133, %v145
    %v147 = vmul.f32 %v146, %v146
    %v148 = vadd.f32 %v121, %v147
    %149 = vrot.lane.b32.xlu0 %v133, 124
    %v150 = vpop.permute.xlu0 %149
    %v151 = vsub.f32 %v133, %v150
    %v152 = vmul.f32 %v151, %v151
    %v153 = vadd.f32 %v126, %v152
    %154 = vrot.lane.b32.xlu0 %v133, 123
    %v155 = vpop.permute.xlu0 %154
    %v156 = vsub.f32 %v133, %v155
    %v157 = vmul.f32 %v156, %v156
    %v158 = vadd.f32 %v131, %v157
    %vm159 = vcmp.ge.s32.totalorder %v51, 0
    %v160 = vadd.s32 %v51, 1
    %vm161 = vcmp.lt.s32.totalorder %v160, 16
    %vm162 = vmand %vm159, %vm161
    %v163 = vsub.f32 0.0, %v138
    %v164 = vmul.f32 %v163, 0.5
    %v165 = vmul.f32 %v164, 1.442695
    %v166 = vpow.pop %v165
    %v167 = vsel %vm162, %v166, 0.0
    %v168 = vadd.f32 %v167, 0.0
    %169 = vrot.lane.b32.xlu0 %v167, 1
    %v170 = vpop.permute.xlu0 %169
    %v171 = vadd.f32 %v168, %v170
    %v172 = vmul.f32 %v167, 2.0
    %v173 = vadd.s32 %v51, 2
    %vm174 = vcmp.lt.s32.totalorder %v173, 16
    %vm175 = vmand %vm159, %vm174
    %v176 = vsub.f32 0.0, %v143
    %v177 = vmul.f32 %v176, 0.5
    %v178 = vmul.f32 %v177, 1.442695
    %v179 = vpow.pop %v178
    %v180 = vsel %vm175, %v179, 0.0
    %v181 = vadd.f32 %v171, %v180
    %182 = vrot.lane.b32.xlu0 %v180, 2
    %v183 = vpop.permute.xlu0 %182
    %v184 = vadd.f32 %v181, %v183
    %v185 = vmul.f32 %v180, 2.0
    %v186 = vadd.s32 %v51, 3
    %vm187 = vcmp.lt.s32.totalorder %v186, 16
    %vm188 = vmand %vm159, %vm187
    %v189 = vsub.f32 0.0, %v148
    %v190 = vmul.f32 %v189, 0.5
    %v191 = vmul.f32 %v190, 1.442695
    %v192 = vpow.pop %v191
    %v193 = vsel %vm188, %v192, 0.0
    %v194 = vadd.f32 %v184, %v193
    %195 = vrot.lane.b32.xlu0 %v193, 3
    %v196 = vpop.permute.xlu0 %195
    %v197 = vadd.f32 %v194, %v196
    %v198 = vmul.f32 %v193, 2.0
    %v199 = vadd.s32 %v51, 4
    %vm200 = vcmp.lt.s32.totalorder %v199, 16
    %vm201 = vmand %vm159, %vm200
    %v202 = vsub.f32 0.0, %v153
    %v203 = vmul.f32 %v202, 0.5
    %v204 = vmul.f32 %v203, 1.442695
    %v205 = vpow.pop %v204
    %v206 = vsel %vm201, %v205, 0.0
    %v207 = vadd.f32 %v197, %v206
    %208 = vrot.lane.b32.xlu0 %v206, 4
    %v209 = vpop.permute.xlu0 %208
    %v210 = vadd.f32 %v207, %v209
    %v211 = vmul.f32 %v206, 2.0
    %v212 = vadd.s32 %v51, 5
    %vm213 = vcmp.lt.s32.totalorder %v212, 16
    %vm214 = vmand %vm159, %vm213
    %v215 = vsub.f32 0.0, %v158
    %v216 = vmul.f32 %v215, 0.5
    %v217 = vmul.f32 %v216, 1.442695
    %v218 = vpow.pop %v217
    %v219 = vsel %vm214, %v218, 0.0
    %v220 = vadd.f32 %v210, %v219
    %221 = vrot.lane.b32.xlu0 %v219, 5
    %v222 = vpop.permute.xlu0 %221
    %v223 = vadd.f32 %v220, %v222
    %v224 = vmul.f32 %v219, 2.0
    %v225 = vsub.f32 %v47, %v223
    %v226 = vmul.f32 %v47, 0.5
    %v227 = vtanh.pop %v226
    %v228 = vmul.f32 %v227, 0.5
    %v229 = vadd.f32 %v228, 0.5
    %230 = vrot.lane.b32.xlu0 %v229, 127
    %v231 = vpop.permute.xlu0 %230
    %v232 = vmul.f32 %v172, %v231
    %v233 = vadd.f32 %v232, 0.0
    %v234 = vmul.f32 %v172, %v229
    %235 = vrot.lane.b32.xlu0 %v234, 1
    %v236 = vpop.permute.xlu0 %235
    %v237 = vadd.f32 %v236, 0.0
    %238 = vrot.lane.b32.xlu0 %v229, 126
    %v239 = vpop.permute.xlu0 %238
    %v240 = vmul.f32 %v185, %v239
    %v241 = vadd.f32 %v233, %v240
    %v242 = vmul.f32 %v185, %v229
    %243 = vrot.lane.b32.xlu0 %v242, 2
    %v244 = vpop.permute.xlu0 %243
    %v245 = vadd.f32 %v237, %v244
    %246 = vrot.lane.b32.xlu0 %v229, 125
    %v247 = vpop.permute.xlu0 %246
    %v248 = vmul.f32 %v198, %v247
    %v249 = vadd.f32 %v241, %v248
    %v250 = vmul.f32 %v198, %v229
    %251 = vrot.lane.b32.xlu0 %v250, 3
    %v252 = vpop.permute.xlu0 %251
    %v253 = vadd.f32 %v245, %v252
    %254 = vrot.lane.b32.xlu0 %v229, 124
    %v255 = vpop.permute.xlu0 %254
    %v256 = vmul.f32 %v211, %v255
    %v257 = vadd.f32 %v249, %v256
    %v258 = vmul.f32 %v211, %v229
    %259 = vrot.lane.b32.xlu0 %v258, 4
    %v260 = vpop.permute.xlu0 %259
    %v261 = vadd.f32 %v253, %v260
    %262 = vrot.lane.b32.xlu0 %v229, 123
    %v263 = vpop.permute.xlu0 %262
    %v264 = vmul.f32 %v224, %v263
    %v265 = vadd.f32 %v257, %v264
    %v266 = vmul.f32 %v224, %v229
    %267 = vrot.lane.b32.xlu0 %v266, 5
    %v268 = vpop.permute.xlu0 %267
    %v269 = vadd.f32 %v261, %v268
    %v270 = vadd.f32 %v265, %v269
    %v271 = vadd.f32 %v225, %v270
    %v272 = vmul.f32 %v271, 0.5
    %v273 = vtanh.pop %v272
    %v274 = vmul.f32 %v273, 0.5
    %v275 = vadd.f32 %v274, 0.5
    %276 = vrot.lane.b32.xlu0 %v275, 127
    %v277 = vpop.permute.xlu0 %276
    %v278 = vmul.f32 %v172, %v277
    %v279 = vadd.f32 %v278, 0.0
    %v280 = vmul.f32 %v172, %v275
    %281 = vrot.lane.b32.xlu0 %v280, 1
    %v282 = vpop.permute.xlu0 %281
    %v283 = vadd.f32 %v282, 0.0
    %284 = vrot.lane.b32.xlu0 %v275, 126
    %v285 = vpop.permute.xlu0 %284
    %v286 = vmul.f32 %v185, %v285
    %v287 = vadd.f32 %v279, %v286
    %v288 = vmul.f32 %v185, %v275
    %289 = vrot.lane.b32.xlu0 %v288, 2
    %v290 = vpop.permute.xlu0 %289
    %v291 = vadd.f32 %v283, %v290
    %292 = vrot.lane.b32.xlu0 %v275, 125
    %v293 = vpop.permute.xlu0 %292
    %v294 = vmul.f32 %v198, %v293
    %v295 = vadd.f32 %v287, %v294
    %v296 = vmul.f32 %v198, %v275
    %297 = vrot.lane.b32.xlu0 %v296, 3
    %v298 = vpop.permute.xlu0 %297
    %v299 = vadd.f32 %v291, %v298
    %300 = vrot.lane.b32.xlu0 %v275, 124
    %v301 = vpop.permute.xlu0 %300
    %v302 = vmul.f32 %v211, %v301
    %v303 = vadd.f32 %v295, %v302
    %v304 = vmul.f32 %v211, %v275
    %305 = vrot.lane.b32.xlu0 %v304, 4
    %v306 = vpop.permute.xlu0 %305
    %v307 = vadd.f32 %v299, %v306
    %308 = vrot.lane.b32.xlu0 %v275, 123
    %v309 = vpop.permute.xlu0 %308
    %v310 = vmul.f32 %v224, %v309
    %v311 = vadd.f32 %v303, %v310
    %v312 = vmul.f32 %v224, %v275
    %313 = vrot.lane.b32.xlu0 %v312, 5
    %v314 = vpop.permute.xlu0 %313
    %v315 = vadd.f32 %v307, %v314
    %v316 = vadd.f32 %v311, %v315
    %v317 = vadd.f32 %v225, %v316
    %v318 = vmul.f32 %v317, 0.5
    %v319 = vtanh.pop %v318
    %v320 = vmul.f32 %v319, 0.5
    %v321 = vadd.f32 %v320, 0.5
    %322 = vrot.lane.b32.xlu0 %v321, 127
    %v323 = vpop.permute.xlu0 %322
    %v324 = vmul.f32 %v172, %v323
    %v325 = vadd.f32 %v324, 0.0
    %v326 = vmul.f32 %v172, %v321
    %327 = vrot.lane.b32.xlu0 %v326, 1
    %v328 = vpop.permute.xlu0 %327
    %v329 = vadd.f32 %v328, 0.0
    %330 = vrot.lane.b32.xlu0 %v321, 126
    %v331 = vpop.permute.xlu0 %330
    %v332 = vmul.f32 %v185, %v331
    %v333 = vadd.f32 %v325, %v332
    %v334 = vmul.f32 %v185, %v321
    %335 = vrot.lane.b32.xlu0 %v334, 2
    %v336 = vpop.permute.xlu0 %335
    %v337 = vadd.f32 %v329, %v336
    %338 = vrot.lane.b32.xlu0 %v321, 125
    %v339 = vpop.permute.xlu0 %338
    %v340 = vmul.f32 %v198, %v339
    %v341 = vadd.f32 %v333, %v340
    %v342 = vmul.f32 %v198, %v321
    %343 = vrot.lane.b32.xlu0 %v342, 3
    %v344 = vpop.permute.xlu0 %343
    %v345 = vadd.f32 %v337, %v344
    %346 = vrot.lane.b32.xlu0 %v321, 124
    %v347 = vpop.permute.xlu0 %346
    %v348 = vmul.f32 %v211, %v347
    %v349 = vadd.f32 %v341, %v348
    %v350 = vmul.f32 %v211, %v321
    %351 = vrot.lane.b32.xlu0 %v350, 4
    %v352 = vpop.permute.xlu0 %351
    %v353 = vadd.f32 %v345, %v352
    %354 = vrot.lane.b32.xlu0 %v321, 123
    %v355 = vpop.permute.xlu0 %354
    %v356 = vmul.f32 %v224, %v355
    %v357 = vadd.f32 %v349, %v356
    %v358 = vmul.f32 %v224, %v321
    %359 = vrot.lane.b32.xlu0 %v358, 5
    %v360 = vpop.permute.xlu0 %359
    %v361 = vadd.f32 %v353, %v360
    %v362 = vadd.f32 %v357, %v361
    %v363 = vadd.f32 %v225, %v362
    %v364 = vmul.f32 %v363, 0.5
    %v365 = vtanh.pop %v364
    %v366 = vmul.f32 %v365, 0.5
    %v367 = vadd.f32 %v366, 0.5
    %368 = vrot.lane.b32.xlu0 %v367, 127
    %v369 = vpop.permute.xlu0 %368
    %v370 = vmul.f32 %v172, %v369
    %v371 = vadd.f32 %v370, 0.0
    %v372 = vmul.f32 %v172, %v367
    %373 = vrot.lane.b32.xlu0 %v372, 1
    %v374 = vpop.permute.xlu0 %373
    %v375 = vadd.f32 %v374, 0.0
    %376 = vrot.lane.b32.xlu0 %v367, 126
    %v377 = vpop.permute.xlu0 %376
    %v378 = vmul.f32 %v185, %v377
    %v379 = vadd.f32 %v371, %v378
    %v380 = vmul.f32 %v185, %v367
    %381 = vrot.lane.b32.xlu0 %v380, 2
    %v382 = vpop.permute.xlu0 %381
    %v383 = vadd.f32 %v375, %v382
    %384 = vrot.lane.b32.xlu0 %v367, 125
    %v385 = vpop.permute.xlu0 %384
    %v386 = vmul.f32 %v198, %v385
    %v387 = vadd.f32 %v379, %v386
    %v388 = vmul.f32 %v198, %v367
    %389 = vrot.lane.b32.xlu0 %v388, 3
    %v390 = vpop.permute.xlu0 %389
    %v391 = vadd.f32 %v383, %v390
    %392 = vrot.lane.b32.xlu0 %v367, 124
    %v393 = vpop.permute.xlu0 %392
    %v394 = vmul.f32 %v211, %v393
    %v395 = vadd.f32 %v387, %v394
    %v396 = vmul.f32 %v211, %v367
    %397 = vrot.lane.b32.xlu0 %v396, 4
    %v398 = vpop.permute.xlu0 %397
    %v399 = vadd.f32 %v391, %v398
    %400 = vrot.lane.b32.xlu0 %v367, 123
    %v401 = vpop.permute.xlu0 %400
    %v402 = vmul.f32 %v224, %v401
    %v403 = vadd.f32 %v395, %v402
    %v404 = vmul.f32 %v224, %v367
    %405 = vrot.lane.b32.xlu0 %v404, 5
    %v406 = vpop.permute.xlu0 %405
    %v407 = vadd.f32 %v399, %v406
    %v408 = vadd.f32 %v403, %v407
    %v409 = vadd.f32 %v225, %v408
    %v410 = vmul.f32 %v409, 0.5
    %v411 = vtanh.pop %v410
    %v412 = vmul.f32 %v411, 0.5
    %v413 = vadd.f32 %v412, 0.5
    %414 = vrot.lane.b32.xlu0 %v413, 127
    %v415 = vpop.permute.xlu0 %414
    %v416 = vmul.f32 %v172, %v415
    %v417 = vadd.f32 %v416, 0.0
    %v418 = vmul.f32 %v172, %v413
    %419 = vrot.lane.b32.xlu0 %v418, 1
    %v420 = vpop.permute.xlu0 %419
    %v421 = vadd.f32 %v420, 0.0
    %422 = vrot.lane.b32.xlu0 %v413, 126
    %v423 = vpop.permute.xlu0 %422
    %v424 = vmul.f32 %v185, %v423
    %v425 = vadd.f32 %v417, %v424
    %v426 = vmul.f32 %v185, %v413
    %427 = vrot.lane.b32.xlu0 %v426, 2
    %v428 = vpop.permute.xlu0 %427
    %v429 = vadd.f32 %v421, %v428
    %430 = vrot.lane.b32.xlu0 %v413, 125
    %v431 = vpop.permute.xlu0 %430
    %v432 = vmul.f32 %v198, %v431
    %v433 = vadd.f32 %v425, %v432
    %v434 = vmul.f32 %v198, %v413
    %435 = vrot.lane.b32.xlu0 %v434, 3
    %v436 = vpop.permute.xlu0 %435
    %v437 = vadd.f32 %v429, %v436
    %438 = vrot.lane.b32.xlu0 %v413, 124
    %v439 = vpop.permute.xlu0 %438
    %v440 = vmul.f32 %v211, %v439
    %v441 = vadd.f32 %v433, %v440
    %v442 = vmul.f32 %v211, %v413
    %443 = vrot.lane.b32.xlu0 %v442, 4
    %v444 = vpop.permute.xlu0 %443
    %v445 = vadd.f32 %v437, %v444
    %446 = vrot.lane.b32.xlu0 %v413, 123
    %v447 = vpop.permute.xlu0 %446
    %v448 = vmul.f32 %v224, %v447
    %v449 = vadd.f32 %v441, %v448
    %v450 = vmul.f32 %v224, %v413
    %451 = vrot.lane.b32.xlu0 %v450, 5
    %v452 = vpop.permute.xlu0 %451
    %v453 = vadd.f32 %v445, %v452
    %v454 = vadd.f32 %v449, %v453
    %v455 = vadd.f32 %v225, %v454
    %v456 = vmul.f32 %v455, 0.5
    %v457 = vtanh.pop %v456
    %v458 = vmul.f32 %v457, 0.5
    %v459 = vadd.f32 %v458, 0.5
    %460 = vst [vmem:[#allocation5] sm:$0xff] %v459
    // Predicated region
    $region10: #{tpu_custom_call.1} parent=1 // pred_check
      _
    $region11: #{tpu_custom_call.1} parent=1 // pred_check_branch
      %462 = sbr.rel (0) target = $region13
    $region12: #{tpu_custom_call.1} parent=1 // pred_region
      %s464 = ssub.s32 128, 128
      %465 = vsyncadd [#allocation6], %s464
      %s467 = sshll.u32 [#allocation5], 4
      %s468 = int_to_ptr.vmem [resolvable:$true] %s467
      %470 = dma.vmem_to_hbm [thread:$0]  %s468, 128, %s2, [#allocation6]
    $region13: #{tpu_custom_call.1} parent=1 // pred_fallthru
      _
    // Predicated region
    $region14: #{tpu_custom_call.1} parent=1 // pred_check
      _
    $region15: #{tpu_custom_call.1} parent=1 // pred_check_branch
      %472 = sbr.rel (0) target = $region17
    $region16: #{tpu_custom_call.1} parent=1 // pred_region
      %473 = dma.done [#allocation6], 128
    $region17: #{tpu_custom_call.1} parent=1 // pred_fallthru
      _
    %474 = vsyncpa [#allocation6], 1
  %475 = vsyncmov [#allocation4]
  %s476 = vpop.sfrf %475
  %p477 = scmp.eq.s32.totalorder %s476, 0
  %p478 = pneg %p477
  %480 = shalt.err (%p478)
  %s481 = scalar_lea.sflag [#allocation4], 1
  %482 = vsyncmov %s481
  %s483 = vpop.sfrf %482
  %p484 = scmp.eq.s32.totalorder %s483, 0
  %p485 = pneg %p484
  %487 = shalt.err (%p485)

</llo_original>
